<compile_context>
chip_gen: v7x
topology: tpu7x:2x2x1
jax: 0.10.0
libtpu: 0.0.40
codegen_flags: <defaults>
</compile_context>

<pallas_src>
import functools

import jax
import jax.numpy as jnp
from jax import lax
from jax.experimental import pallas as pl
from jax.experimental.pallas import tpu as pltpu


# ------------------------------- kernels ---------------------------------- #
def _dot_general_kernel(q_ref, enc_ref, out_ref, *, s_actual, s_tile, s_pad):
    # q_ref   : (Bt, H)          hidden (already W-projected for 'general')
    # enc_ref : (St, Bt, H)      encoder tile, native (S, B, H) layout
    # out_ref : (1, Bt, St)      raw scores, sequence on the lane axis
    si = pl.program_id(1)

    enc = enc_ref[...].astype(jnp.float32)            # per-tile upcast (v5e: no bf16 VPU)
    q = q_ref[...].astype(jnp.float32)
    scores = jnp.sum(enc * q[None, :, :], axis=-1)    # (St, Bt)
    scores = scores.T                                  # (Bt, St) lane-dense; XLU transpose

    if s_pad != s_actual:  # static: only emitted when the last S tile is ragged
        col = si * s_tile + lax.broadcasted_iota(jnp.int32, scores.shape, 1)
        scores = jnp.where(col < s_actual, scores, -1e30)

    out_ref[...] = scores[None]


def _concat_kernel(hidp_ref, wet_ref, v_ref, enc_ref, out_ref, *,
                   s_actual, s_tile, s_pad):
    # hidp_ref: (Bt, H)          = hid @ Wh^T + b   (S-independent, precomputed, f32)
    # wet_ref : (H, H)           = We^T             (pre-transposed, encoder dtype)
    # v_ref   : (1, H)           f32
    # enc_ref : (St, Bt, H)
    # out_ref : (1, Bt, St)
    si = pl.program_id(1)

    enc = enc_ref[...]                                 # (St, Bt, H), caller dtype
    St, Bt, H = enc.shape
    # Linear over concat([hidden, enc]) == (hid @ Wh^T + b) + enc @ We^T.
    # NOTE: when Bt % 8 != 0 the reshape relayouts the tile in VMEM; acceptable
    # because such tiles only occur for tiny batches (B < 8).
    proj = jnp.dot(enc.reshape(St * Bt, H), wet_ref[...],
                   preferred_element_type=jnp.float32)           # MXU: (St*Bt, H)
    energy = jnp.tanh(proj.reshape(St, Bt, H) + hidp_ref[...][None, :, :])
    scores = jnp.sum(energy * v_ref[...][None, :, :], axis=-1)   # (St, Bt)
    scores = scores.T                                             # (Bt, St)

    if s_pad != s_actual:
        col = si * s_tile + lax.broadcasted_iota(jnp.int32, scores.shape, 1)
        scores = jnp.where(col < s_actual, scores, -1e30)

    out_ref[...] = scores[None]


# ------------------------------- helpers ----------------------------------- #
def _vmem_capacity_bytes():
    try:
        info = pltpu.get_tpu_info()
        return int(getattr(info, "vmem_capacity_bytes", 128 * 1024 * 1024))
    except Exception:
        return 128 * 1024 * 1024


# ------------------------------- wrapper ----------------------------------- #
class AttnPallas:
    """Pallas TPU port of the PyTorch `Attn` module (forward pass only)."""

    def __init__(self, method, hidden_size, key, max_s_tile=None, max_b_tile=None):
        if method not in ("dot", "general", "concat"):
            raise ValueError(method, "is not an appropriate attention method.")
        self.method = method
        self.hidden_size = hidden_size
        self.max_s_tile = max_s_tile
        self.max_b_tile = max_b_tile
        H = hidden_size
        k1, k2, k3 = jax.random.split(key, 3)
        if method == "general":
            bound = 1.0 / jnp.sqrt(H)
            self.w = jax.random.uniform(k1, (H, H), jnp.float32, -bound, bound)
            self.b = jax.random.uniform(k2, (H,), jnp.float32, -bound, bound)
        elif method == "concat":
            bound = 1.0 / jnp.sqrt(2 * H)
            self.w = jax.random.uniform(k1, (H, 2 * H), jnp.float32, -bound, bound)
            self.b = jax.random.uniform(k2, (H,), jnp.float32, -bound, bound)
            self.v = jax.random.uniform(k3, (H,), jnp.float32, -1.0, 1.0)

    # ------------------------- tiling policy ------------------------------- #
    def _tiles(self, S, B, H, itemsize):
        vmem_cap = _vmem_capacity_bytes()
        # Generation-aware enc-tile budget (Pallas double-buffers this block):
        # ~6 MiB on 128 MiB-VMEM chips (v5e/v6e), ~3 MiB on 64 MiB-VMEM (v7x).
        target = (6 << 20) if vmem_cap >= (96 << 20) else (3 << 20)

        # Prefer the full batch per block -> fully contiguous HBM slabs.
        b_tile = B
        if (self.max_b_tile is not None and self.max_b_tile < B
                and B % self.max_b_tile == 0 and self.max_b_tile % 8 == 0):
            b_tile = self.max_b_tile
        elif B % 8 == 0 and B > 8 and B * H * itemsize * 128 > target:
            b_tile = 8  # keep S tiles at >= 128 rows

        row_bytes = b_tile * H * itemsize
        cap = max(128, (target // max(row_bytes, 1)) // 128 * 128)
        if self.max_s_tile is not None and self.max_s_tile >= 128:
            cap = min(cap, (self.max_s_tile // 128) * 128)

        if S <= cap:
            s_tile, grid_s, s_pad = S, 1, S
        else:
            s_tile = cap                              # multiple of 128 -> lane-dense stores
            grid_s = pl.cdiv(S, s_tile)
            s_pad = grid_s * s_tile
        grid_b = B // b_tile
        return vmem_cap, b_tile, grid_b, s_tile, grid_s, s_pad

    def __call__(self, hidden, encoder_outputs):
        # hidden: (1, B, H), encoder_outputs: (S, B, H)  -- PyTorch layout
        S, B, H = encoder_outputs.shape
        enc = encoder_outputs                         # keep caller dtype; no host copy
        hid = hidden[0]
        hid32 = hid.astype(jnp.float32)
        itemsize = jnp.dtype(enc.dtype).itemsize

        vmem_cap, b_tile, grid_b, s_tile, grid_s, s_pad = self._tiles(S, B, H, itemsize)

        enc_spec = pl.BlockSpec((s_tile, b_tile, H), lambda bi, si: (si, bi, 0))
        vec_spec = pl.BlockSpec((b_tile, H), lambda bi, si: (bi, 0))
        out_spec = pl.BlockSpec((1, b_tile, s_tile), lambda bi, si: (bi, 0, si))
        out_shape = jax.ShapeDtypeStruct((grid_b, b_tile, s_pad), jnp.float32)

        # Usage-derived VMEM limit with headroom, never the full physical VMEM.
        enc_blk = s_tile * b_tile * H * itemsize
        out_blk = b_tile * s_tile * 4
        vec_blk = b_tile * H * 4
        wts = (H * H * itemsize + H * 4) if self.method == "concat" else 0
        usage = 2 * (enc_blk + out_blk + vec_blk + wts)
        vmem_limit = max(16 << 20, min(int(0.75 * vmem_cap), usage + (16 << 20)))

        compiler_params = pltpu.CompilerParams(
            dimension_semantics=("parallel", "parallel"),
            vmem_limit_bytes=vmem_limit)

        if self.method in ("dot", "general"):
            if self.method == "dot":
                q = hid
            else:
                # score = hid . (enc @ W^T + b); the hid.b term is constant over S
                # and cancels in the softmax -> fold W into the hidden vector once.
                q = jnp.dot(hid32, self.w, precision="highest")          # (B, H)
            kernel = functools.partial(_dot_general_kernel,
                                       s_actual=S, s_tile=s_tile, s_pad=s_pad)
            cost = pl.CostEstimate(
                flops=2 * B * S * H,
                transcendentals=0,
                bytes_accessed=S * B * H * itemsize + B * H * 4 + B * s_pad * 4)
            raw = pl.pallas_call(
                kernel,
                out_shape=out_shape,
                grid_spec=pltpu.PrefetchScalarGridSpec(
                    num_scalar_prefetch=0,
                    grid=(grid_b, grid_s),
                    in_specs=[vec_spec, enc_spec],
                    out_specs=out_spec),
                compiler_params=compiler_params,
                cost_estimate=cost,
            )(q, enc)
        else:  # concat
            wh = self.w[:, :H]
            we = self.w[:, H:]
            # Hidden part of the Linear is independent of S: hoist it out of the kernel.
            hid_part = jnp.dot(hid32, wh.T, precision="highest") + self.b    # (B, H) f32
            we_t = we.T.astype(enc.dtype)            # feed the MXU in enc's dtype
            v2 = self.v.reshape(1, H)
            kernel = functools.partial(_concat_kernel,
                                       s_actual=S, s_tile=s_tile, s_pad=s_pad)
            cost = pl.CostEstimate(
                flops=2 * B * S * H * H + 4 * B * S * H,
                transcendentals=B * S * H,
                bytes_accessed=(S * B * H * itemsize + B * H * 4
                                + H * H * itemsize + H * 4 + B * s_pad * 4))
            raw = pl.pallas_call(
                kernel,
                out_shape=out_shape,
                grid_spec=pltpu.PrefetchScalarGridSpec(
                    num_scalar_prefetch=0,
                    grid=(grid_b, grid_s),
                    in_specs=[vec_spec,
                              pl.BlockSpec((H, H), lambda bi, si: (0, 0)),
                              pl.BlockSpec((1, H), lambda bi, si: (0, 0)),
                              enc_spec],
                    out_specs=out_spec),
                compiler_params=compiler_params,
                cost_estimate=cost,
            )(hid_part, we_t, v2, enc)

        # (grid_b, b_tile, s_pad) -> (B, S) is a pure reshape (no transpose); padded
        # columns were masked in-kernel and are sliced off before the softmax.
        scores = raw.reshape(B, s_pad)[:, :S]
        probs = jax.nn.softmax(scores, axis=1)       # trivial (B, S) op in XLA
        # PyTorch returns softmax(energies.t(), dim=1).unsqueeze(1) -> (B, 1, S)
        return probs[:, None, :]


# --------------------------- pure-JAX reference ----------------------------- #
def _reference(attn, hidden, encoder_outputs):
    method = attn.method
    hidden = hidden.astype(jnp.float32)
    encoder_outputs = encoder_outputs.astype(jnp.float32)
    if method == "dot":
        scores = jnp.sum(hidden * encoder_outputs, axis=2)                     # (S, B)
    elif method == "general":
        energy = jnp.dot(encoder_outputs, attn.w.T, precision="highest") + attn.b
        scores = jnp.sum(hidden * energy, axis=2)
    else:
        S = encoder_outputs.shape[0]
        hid_exp = jnp.broadcast_to(hidden, (S,) + hidden.shape[1:])
        cat = jnp.concatenate([hid_exp, encoder_outputs], axis=2)
        energy = jnp.tanh(jnp.dot(cat, attn.w.T, precision="highest") + attn.b)
        scores = jnp.sum(attn.v * energy, axis=2)
    scores = scores.T                                                          # (B, S)
    return jax.nn.softmax(scores, axis=1)[:, None, :]                          # (B, 1, S)


if __name__ == "__main__":
    key = jax.random.PRNGKey(0)
    ok = True

    # Case 1: small shapes implied by the module.
    # Case 2: real tiling (2 batch tiles x 2 sequence tiles), lane-dense 128-wide S tiles.
    # Case 3: ragged last sequence tile (S not a multiple of the tile) to exercise masking.
    cases = [
        dict(B=2, S=8, H=32, max_s_tile=None, max_b_tile=None),
        dict(B=16, S=256, H=128, max_s_tile=128, max_b_tile=8),
        dict(B=4, S=200, H=128, max_s_tile=128, max_b_tile=None),
    ]
    for c in cases:
        B, S, H = c["B"], c["S"], c["H"]
        k_h, k_e, k_p = jax.random.split(jax.random.fold_in(key, 1000 * B + S), 3)
        hidden = jax.random.normal(k_h, (1, B, H), jnp.float32)           # decoder hidden
        encoder_outputs = jax.random.normal(k_e, (S, B, H), jnp.float32)  # encoder states
        for method in ("dot", "general", "concat"):
            attn = AttnPallas(method, H, k_p,
                              max_s_tile=c["max_s_tile"], max_b_tile=c["max_b_tile"])
            out = jax.block_until_ready(attn(hidden, encoder_outputs))
            ref = jax.block_until_ready(_reference(attn, hidden, encoder_outputs))
            assert out.shape == (B, 1, S), (method, out.shape)
            if not jnp.allclose(out, ref, atol=5e-5, rtol=5e-4):
                ok = False
                err = float(jnp.max(jnp.abs(out - ref)))
                print(f"MISMATCH method={method} B={B} S={S} H={H} max_abs_err={err}")
    if ok:
        print("KERNEL_OK")
</pallas_src>

<mosaic_0001>
module attributes {stable_mosaic.version = 11 : i64} {
  func.func @_dot_general_kernel(%arg0: i32, %arg1: i32, %arg2: memref<2x32xf32, #tpu.memory_space<vmem>>, %arg3: memref<8x2x32xf32, #tpu.memory_space<vmem>>, %arg4: memref<1x2x8xf32, #tpu.memory_space<vmem>>) attributes {dimension_semantics = [#tpu.dimension_semantics<parallel>, #tpu.dimension_semantics<parallel>], iteration_bounds = array<i64: 1, 1>, scalar_prefetch = 0 : i64, scratch_operands = 0 : i64, tpu.core_type = #tpu.core_type<tc>, window_params = [{transform_indices = @transform_0, window_bounds = array<i64: 2, 32>}, {transform_indices = @transform_1, window_bounds = array<i64: 8, 2, 32>}, {transform_indices = @transform_2, window_bounds = array<i64: 1, 2, 8>}]} {
    %c0 = arith.constant 0 : index
    %c0_0 = arith.constant 0 : index
    %c0_1 = arith.constant 0 : index
    %0 = vector.load %arg3[%c0, %c0_0, %c0_1] : memref<8x2x32xf32, #tpu.memory_space<vmem>>, vector<8x2x32xf32>
    %c0_2 = arith.constant 0 : index
    %c0_3 = arith.constant 0 : index
    %1 = vector.load %arg2[%c0_2, %c0_3] : memref<2x32xf32, #tpu.memory_space<vmem>>, vector<2x32xf32>
    %2 = vector.shape_cast %1 : vector<2x32xf32> to vector<1x2x32xf32>
    %3 = vector.broadcast %2 : vector<1x2x32xf32> to vector<8x2x32xf32>
    %4 = arith.mulf %0, %3 : vector<8x2x32xf32>
    %cst = arith.constant dense<0.000000e+00> : vector<8x2xf32>
    %5 = vector.multi_reduction <add>, %4, %cst [2] : vector<8x2x32xf32> to vector<8x2xf32>
    %6 = tpu.transpose %5, [1, 0] : vector<8x2xf32> -> vector<2x8xf32>
    %7 = vector.shape_cast %6 : vector<2x8xf32> to vector<1x2x8xf32>
    %c0_4 = arith.constant 0 : index
    %c0_5 = arith.constant 0 : index
    %c0_6 = arith.constant 0 : index
    %8 = vector.load %arg4[%c0_4, %c0_5, %c0_6] : memref<1x2x8xf32, #tpu.memory_space<vmem>>, vector<1x2x8xf32>
    tpu.vector_store %arg4[%c0_4, %c0_5, %c0_6], %7 {strides = array<i32>} : memref<1x2x8xf32, #tpu.memory_space<vmem>>, vector<1x2x8xf32>,
    return
  }
  func.func @transform_0(%arg0: i32, %arg1: i32) -> (i32, i32) {
    %c0_i32 = arith.constant 0 : i32
    %c0_i32_0 = arith.constant 0 : i32
    return %arg0, %c0_i32 : i32, i32
  }
  func.func @transform_1(%arg0: i32, %arg1: i32) -> (i32, i32, i32) {
    %c0_i32 = arith.constant 0 : i32
    %c0_i32_0 = arith.constant 0 : i32
    return %arg1, %arg0, %c0_i32 : i32, i32, i32
  }
  func.func @transform_2(%arg0: i32, %arg1: i32) -> (i32, i32, i32) {
    %c0_i32 = arith.constant 0 : i32
    %c0_i32_0 = arith.constant 0 : i32
    return %arg0, %c0_i32, %arg1 : i32, i32, i32
  }
}

</mosaic_0001>

<llo_original>
// kernel: tpu_custom_call.1
$region0: #{tpu_custom_call.1}
  #allocation0 [shape = 'u32[]', space=smem, size = 0x4, offset = 0x4, fixed_abs, tag = 'smem constant byte address 0x4 - core index']
  #allocation1 [shape = 'u32[144,128]{1,0:T(1,128)}', space=vmem, size = 0x12000, scoped, tag = 'internal scratch']
  %s0 = inlined_call_operand.hbm [shape: f32[2,32], index: 0, kind: input, shape index: {}]
  %s1 = inlined_call_operand.hbm [shape: f32[8,2,32], index: 1, kind: input, shape index: {}]
  %s2 = inlined_call_operand.hbm [shape: f32[1,2,8], index: 2, kind: output, shape index: {}]
  %s3 = sld [smem:[#allocation0]]
  $region26: #{tpu_custom_call.1} parent=0
    _
  %s5 = ssub.s32 1, %s3
  %s6 = scalar_select 0, %s5, %s3
  $region1: #{tpu_custom_call.1} parent=0
    #allocation2 [shape = 'u8[1024]{0}', space=vmem, size = 0x400, scoped, tag = 'input window, operand 0, single buffered']
    #allocation3 [shape = 's32[1]{0}', space=sflag, size = 0x4, scoped, tag = 'scoped memory for tpu_custom_call.1']
    #allocation4 [shape = 's32[1]{0}', space=sflag, size = 0x4, scoped, tag = 'scoped memory for tpu_custom_call.1']
    #allocation5 [shape = 'u8[8192]{0}', space=vmem, size = 0x2000, scoped, tag = 'input window, operand 1, single buffered']
    #allocation6 [shape = 's32[1]{0}', space=sflag, size = 0x4, scoped, tag = 'scoped memory for tpu_custom_call.1']
    #allocation7 [shape = 'u8[1024]{0}', space=vmem, size = 0x400, scoped, tag = 'output window, operand 0, single buffered']
    %7 = vsyncpa [#allocation3], 0
    %8 = vsyncpa [#allocation6], 0
    %9 = vsyncpa [#allocation4], 0
    // Predicated region
    $region2: #{tpu_custom_call.1} parent=1 // pred_check
      _
    $region3: #{tpu_custom_call.1} parent=1 // pred_check_branch
      %11 = sbr.rel (0) target = $region5
    $region4: #{tpu_custom_call.1} parent=1 // pred_region
      %s13 = ssub.s32 32, 32
      %14 = vsyncadd [#allocation3], %s13
      %s16 = sshll.u32 [#allocation2], 4
      %s17 = int_to_ptr.vmem [resolvable:$true] %s16
      %19 = dma.hbm_to_vmem [thread:$0]  %s0, 32, %s17, [#allocation3]
    $region5: #{tpu_custom_call.1} parent=1 // pred_fallthru
      _
    // Predicated region
    $region6: #{tpu_custom_call.1} parent=1 // pred_check
      _
    $region7: #{tpu_custom_call.1} parent=1 // pred_check_branch
      %21 = sbr.rel (0) target = $region9
    $region8: #{tpu_custom_call.1} parent=1 // pred_region
      %s23 = ssub.s32 256, 256
      %24 = vsyncadd [#allocation6], %s23
      %s25 = sshll.u32 [#allocation5], 4
      %s26 = int_to_ptr.vmem [resolvable:$true] %s25
      %31 = dma.hbm_to_vmem [thread:$0]  %s1, 256, %s26, [#allocation6], 32, 32, 2
    $region9: #{tpu_custom_call.1} parent=1 // pred_fallthru
      _
    // Predicated region
    $region10: #{tpu_custom_call.1} parent=1 // pred_check
      _
    $region11: #{tpu_custom_call.1} parent=1 // pred_check_branch
      %33 = sbr.rel (0) target = $region13
    $region12: #{tpu_custom_call.1} parent=1 // pred_region
      %34 = dma.done [#allocation3], 32
    $region13: #{tpu_custom_call.1} parent=1 // pred_fallthru
      _
    // Predicated region
    $region14: #{tpu_custom_call.1} parent=1 // pred_check
      _
    $region15: #{tpu_custom_call.1} parent=1 // pred_check_branch
      %36 = sbr.rel (0) target = $region17
    $region16: #{tpu_custom_call.1} parent=1 // pred_region
      %37 = dma.done [#allocation6], 256
    $region17: #{tpu_custom_call.1} parent=1 // pred_fallthru
      _
    %v38 = vld [vmem:[#allocation5] sm:$0x3]
    %v39 = vld [vmem:[#allocation5 + $0x2] sm:$0x3]
    %v40 = vld [vmem:[#allocation5 + $0x4] sm:$0x3]
    %v41 = vld [vmem:[#allocation5 + $0x6] sm:$0x3]
    %v42 = vld [vmem:[#allocation5 + $0x8] sm:$0x3]
    %v43 = vld [vmem:[#allocation5 + $0xa] sm:$0x3]
    %v44 = vld [vmem:[#allocation5 + $0xc] sm:$0x3]
    %v45 = vld [vmem:[#allocation5 + $0xe] sm:$0x3]
    %v46 = vld [vmem:[#allocation2] sm:$0x3]
    %v47 = vmul.f32 %v38, %v46
    %v48 = vmul.f32 %v39, %v46
    %v49 = vmul.f32 %v40, %v46
    %v50 = vmul.f32 %v41, %v46
    %v51 = vmul.f32 %v42, %v46
    %v52 = vmul.f32 %v43, %v46
    %v53 = vmul.f32 %v44, %v46
    %v54 = vmul.f32 %v45, %v46
    %vm55 = vcmask 254976
    %v56 = vsel %vm55, %v47, 0.0
    %57 = vadd.xlane.f32.xlu0 %v56
    %v58 = vpop.xlane.xlu0 %57
    %v59 = vsel %vm55, %v48, 0.0
    %60 = vadd.xlane.f32.xlu0 %v59
    %v61 = vpop.xlane.xlu0 %60
    %v62 = vsel %vm55, %v49, 0.0
    %63 = vadd.xlane.f32.xlu0 %v62
    %v64 = vpop.xlane.xlu0 %63
    %v65 = vsel %vm55, %v50, 0.0
    %66 = vadd.xlane.f32.xlu0 %v65
    %v67 = vpop.xlane.xlu0 %66
    %v68 = vsel %vm55, %v51, 0.0
    %69 = vadd.xlane.f32.xlu0 %v68
    %v70 = vpop.xlane.xlu0 %69
    %v71 = vsel %vm55, %v52, 0.0
    %72 = vadd.xlane.f32.xlu0 %v71
    %v73 = vpop.xlane.xlu0 %72
    %v74 = vsel %vm55, %v53, 0.0
    %75 = vadd.xlane.f32.xlu0 %v74
    %v76 = vpop.xlane.xlu0 %75
    %v77 = vsel %vm55, %v54, 0.0
    %78 = vadd.xlane.f32.xlu0 %v77
    %v79 = vpop.xlane.xlu0 %78
    %v88 = vlaneseq
    %v89 = vand.u32 %v88, 127
    %v90 = vlaneseq
    %v91 = vshrl.u32 %v90, 7
    %v92 = vsub.s32 %v89, %v91
    %v93 = vrot.slane %v58, %v92
    %v94 = vlaneseq
    %v95 = vshrl.u32 %v94, 7
    %v96 = vsub.s32 %v89, %v95
    %v97 = vrot.slane %v61, %v96
    %v98 = vlaneseq
    %v99 = vshrl.u32 %v98, 7
    %v100 = vsub.s32 %v89, %v99
    %v101 = vrot.slane %v64, %v100
    %v102 = vlaneseq
    %v103 = vshrl.u32 %v102, 7
    %v104 = vsub.s32 %v89, %v103
    %v105 = vrot.slane %v67, %v104
    %v106 = vlaneseq
    %v107 = vshrl.u32 %v106, 7
    %v108 = vsub.s32 %v89, %v107
    %v109 = vrot.slane %v70, %v108
    %v110 = vlaneseq
    %v111 = vshrl.u32 %v110, 7
    %v112 = vsub.s32 %v89, %v111
    %v113 = vrot.slane %v73, %v112
    %v114 = vlaneseq
    %v115 = vshrl.u32 %v114, 7
    %v116 = vsub.s32 %v89, %v115
    %v117 = vrot.slane %v76, %v116
    %v118 = vlaneseq
    %v119 = vshrl.u32 %v118, 7
    %v120 = vsub.s32 %v89, %v119
    %v121 = vrot.slane %v79, %v120
    %vm122 = vcmask 1041409
    %v123 = vsel %vm122, %v97, %v93
    %vm124 = vcmask 1042434
    %v125 = vsel %vm124, %v101, %v123
    %vm126 = vcmask 1043459
    %v127 = vsel %vm126, %v105, %v125
    %vm128 = vcmask 1044484
    %v129 = vsel %vm128, %v109, %v127
    %vm130 = vcmask 1045509
    %v131 = vsel %vm130, %v113, %v129
    %vm132 = vcmask 1046534
    %v133 = vsel %vm132, %v117, %v131
    %vm134 = vcmask 1047559
    %v135 = vsel %vm134, %v121, %v133
    %137 = vxpose.xlu0.b32.start [1/16] %v135, 128
    %138 = vxpose.xlu0.b32.cont [2/16] 0.0, 128
    %139 = vxpose.xlu0.b32.cont [3/16] 0.0, 128
    %140 = vxpose.xlu0.b32.cont [4/16] 0.0, 128
    %141 = vxpose.xlu0.b32.cont [5/16] 0.0, 128
    %142 = vxpose.xlu0.b32.cont [6/16] 0.0, 128
    %143 = vxpose.xlu0.b32.cont [7/16] 0.0, 128
    %144 = vxpose.xlu0.b32.cont [8/16] 0.0, 128
    %145 = vxpose.xlu0.b32.cont [9/16] 0.0, 128
    %146 = vxpose.xlu0.b32.cont [10/16] 0.0, 128
    %147 = vxpose.xlu0.b32.cont [11/16] 0.0, 128
    %148 = vxpose.xlu0.b32.cont [12/16] 0.0, 128
    %149 = vxpose.xlu0.b32.cont [13/16] 0.0, 128
    %150 = vxpose.xlu0.b32.cont [14/16] 0.0, 128
    %151 = vxpose.xlu0.b32.cont [15/16] 0.0, 128
    %152 = vxpose.xlu0.b32.end [16/16] 0.0, 128
    %v153 = vpop.trf.xlu0
    %v154 = vpop.trf.xlu0
    %v155 = vpop.trf.xlu0
    %v156 = vpop.trf.xlu0
    %v157 = vpop.trf.xlu0
    %v158 = vpop.trf.xlu0
    %v159 = vpop.trf.xlu0
    %v160 = vpop.trf.xlu0
    %v161 = vpop.trf.xlu0
    %v162 = vpop.trf.xlu0
    %v163 = vpop.trf.xlu0
    %v164 = vpop.trf.xlu0
    %v165 = vpop.trf.xlu0
    %v166 = vpop.trf.xlu0
    %v167 = vpop.trf.xlu0
    %v168 = vpop.trf.xlu0
    %vm169 = vcmask 58368
    %170 = vst.msk [vmem:[#allocation7] sm:$0x3] %vm169, %v153
    // Predicated region
    $region18: #{tpu_custom_call.1} parent=1 // pred_check
      _
    $region19: #{tpu_custom_call.1} parent=1 // pred_check_branch
      %172 = sbr.rel (0) target = $region21
    $region20: #{tpu_custom_call.1} parent=1 // pred_region
      %s174 = ssub.s32 32, 32
      %175 = vsyncadd [#allocation4], %s174
      %s177 = sshll.u32 [#allocation7], 4
      %s178 = int_to_ptr.vmem [resolvable:$true] %s177
      %180 = dma.vmem_to_hbm [thread:$0]  %s178, 32, %s2, [#allocation4]
    $region21: #{tpu_custom_call.1} parent=1 // pred_fallthru
      _
    // Predicated region
    $region22: #{tpu_custom_call.1} parent=1 // pred_check
      _
    $region23: #{tpu_custom_call.1} parent=1 // pred_check_branch
      %182 = sbr.rel (0) target = $region25
    $region24: #{tpu_custom_call.1} parent=1 // pred_region
      %183 = dma.done [#allocation4], 32
    $region25: #{tpu_custom_call.1} parent=1 // pred_fallthru
      _
    %184 = vsyncpa [#allocation3], 1
    %185 = vsyncpa [#allocation6], 1
    %186 = vsyncpa [#allocation4], 1

</llo_original>
